<compile_context>
chip_gen: v6e
topology: v6e:2x2x1
jax: 0.10.0
libtpu: 0.0.40
codegen_flags: <defaults>
</compile_context>

<pallas_src>
from typing import NamedTuple

import jax
import jax.numpy as jnp
from jax.experimental import pallas as pl
from jax.experimental.pallas import tpu as pltpu


def _round_up(x, m):
    return ((x + m - 1) // m) * m


def _vmem_capacity_bytes():
    try:
        return int(pltpu.get_tpu_info().vmem_capacity_bytes)
    except Exception:
        return 64 << 20          # conservative fallback (v7x-sized VMEM)


class FfnPlan(NamedTuple):
    tm: int            # row tile (tokens per grid step)
    n_pad: int         # padded token count
    tk: int            # d_ff tile
    dff_pad: int       # padded d_ff
    resident: bool     # True -> weights DMA'd once per call (tk == dff_pad)
    vmem_limit: int    # scoped-VMEM limit handed to Mosaic


def plan_ffn_tiling(N, D, d_ff, *, tk_hint=512):
    """Pick tm / tk / residency from the chip's VMEM capacity."""
    vmem_cap = _vmem_capacity_bytes()
    small_vmem = vmem_cap < (96 << 20)      # v7x-class part (64 MiB, 2 TCs/chip)

    # Generation-aware scoped-VMEM budget (leave headroom below physical).
    if small_vmem:
        budget = min(vmem_cap - (8 << 20), 56 << 20)
    else:
        budget = min(vmem_cap - (8 << 20), 100 << 20)

    # ---- d_ff tiling / weight residency -------------------------------------
    # Double-buffered bf16 W1 + W2 if kept fully resident.
    resident_weight_bytes = 2 * (2 * D * d_ff * 2)
    resident = (d_ff <= tk_hint) or (resident_weight_bytes <= budget - (24 << 20))
    if resident:
        tk = d_ff
        dff_pad = d_ff
    else:
        tk = _round_up(min(tk_hint, d_ff), 256)     # 256-aligned MXU-friendly chunks
        dff_pad = _round_up(d_ff, tk)

    # ---- row tile: above the weight-streaming roofline, VMEM permitting -----
    tm = 512 if small_vmem else 768
    tm = min(_round_up(tm, 8), _round_up(N, 8))

    def footprint(tm_):
        tiles = 2 * 2 * tm_ * D * 4                      # x + out tiles, double-buffered f32
        weights = 2 * (D * tk * 2 + tk * D * 2           # W1 + W2 chunks (bf16), dbl-buffered
                       + tk * 4 + 3 * D * 4)             # b1 chunk + gamma / beta / b2
        scratch = tm_ * D * (2 + 4)                      # xn cache (bf16) + acc (f32)
        interm = tm_ * tk * (4 + 2)                      # h (f32) + bf16 copy of h
        return tiles + weights + scratch + interm

    while tm > 8 and footprint(tm) > budget:
        tm = _round_up(tm // 2, 8)

    n_pad = _round_up(N, tm)

    # v7x: 2 TensorCores share the "parallel" row axis -> keep >= 2 row tiles.
    if small_vmem:
        while n_pad // tm < 2 and tm > 8:
            tm = _round_up(max(tm // 2, 8), 8)
            n_pad = _round_up(N, tm)

    vmem_limit = int(min(budget, max(int(1.5 * footprint(tm)), 32 << 20)))
    return FfnPlan(tm=tm, n_pad=n_pad, tk=tk, dff_pad=dff_pad,
                   resident=resident, vmem_limit=vmem_limit)


def prepare_ffn_params(gamma, beta, w1, b1, w2, b2, plan):
    """Pad + cast the static parameters ONCE (hoisted out of the per-call path)."""
    D, d_ff = w1.shape
    pad = plan.dff_pad - d_ff
    if pad:
        # Zero-padded W1/b1 columns give relu(0) = 0 which contributes nothing
        # through the zero-padded W2 rows -> padding is numerically benign.
        w1 = jnp.pad(w1, ((0, 0), (0, pad)))
        b1 = jnp.pad(b1, (0, pad))
        w2 = jnp.pad(w2, ((0, pad), (0, 0)))
    return (gamma.reshape(1, D).astype(jnp.float32),
            beta.reshape(1, D).astype(jnp.float32),
            w1.astype(jnp.bfloat16),                      # bf16 MXU operands
            b1.reshape(1, plan.dff_pad).astype(jnp.float32),
            w2.astype(jnp.bfloat16),
            b2.reshape(1, D).astype(jnp.float32))


def ffn_sublayer_kernel(x_ref, g_ref, beta_ref, w1_ref, b1_ref, w2_ref, b2_ref,
                        o_ref, xn_ref, acc_ref):
    # Grid: (row tiles, d_ff tiles).  x/o/gamma/beta/b2 blocks are constant in k
    # so they stay resident across the k loop; W1/W2/b1 stream in d_ff chunks
    # (or are fully resident when the grid's k extent is 1).
    k = pl.program_id(1)
    nk = pl.num_programs(1)

    @pl.when(k == 0)
    def _init():
        # ---- LayerNorm over the feature axis (eps matches nn.LayerNorm) ----
        x = x_ref[...].astype(jnp.float32)
        mean = jnp.mean(x, axis=-1, keepdims=True)
        var = jnp.mean((x - mean) * (x - mean), axis=-1, keepdims=True)
        xn = (x - mean) * jax.lax.rsqrt(var + 1e-5)
        xn = xn * g_ref[...].astype(jnp.float32) + beta_ref[...].astype(jnp.float32)
        xn_ref[...] = xn.astype(xn_ref.dtype)          # bf16 cache for the MXU
        acc_ref[...] = jnp.zeros_like(acc_ref)

    # ---- One d_ff chunk of the position-wise FFN, f32 accumulation ----
    h = jnp.dot(xn_ref[...], w1_ref[...], preferred_element_type=jnp.float32)
    h = jnp.maximum(h + b1_ref[...].astype(jnp.float32), 0.0)
    # Cast immediately after bias+ReLU so the big (tm x tk) operand hits the
    # second matmul at half width (relieves vst/vld + internal scratch).
    acc_ref[...] += jnp.dot(h.astype(w2_ref.dtype), w2_ref[...],
                            preferred_element_type=jnp.float32)

    @pl.when(k == nk - 1)
    def _finalize():
        # TODO(synk): dropout is identity in eval mode; training-mode dropout
        # would need pltpu.prng_seed / prng_random_bits masking here.
        y = acc_ref[...] + b2_ref[...].astype(jnp.float32)
        o_ref[...] = (x_ref[...].astype(jnp.float32) + y).astype(o_ref.dtype)


def ffn_sublayer_forward(x, params, plan):
    """x: (batch, seq, size) float32. params from prepare_ffn_params()."""
    B, S, D = x.shape
    N = B * S
    g2d, be2d, w1_p, b1_2d, w2_p, b2_2d = params

    x2d = x.reshape(N, D)
    if plan.n_pad != N:
        x2d = jnp.pad(x2d, ((0, plan.n_pad - N), (0, 0)))

    grid = (plan.n_pad // plan.tm, plan.dff_pad // plan.tk)

    # With resident weights (grid[1] == 1, constant block index) W1/W2 are
    # DMA'd once per call; otherwise they are re-streamed once per row tile.
    weight_passes = 1 if grid[1] == 1 else grid[0]
    cost = pl.CostEstimate(
        flops=4 * plan.n_pad * D * plan.dff_pad,
        transcendentals=plan.n_pad,
        bytes_accessed=(2 * plan.n_pad * D * 4                       # x in + out
                        + weight_passes * 2 * D * plan.dff_pad * 2   # W1 + W2 (bf16)
                        + plan.dff_pad * 4 + 3 * D * 4),             # biases / LN params
    )

    out2d = pl.pallas_call(
        ffn_sublayer_kernel,
        out_shape=jax.ShapeDtypeStruct((plan.n_pad, D), x.dtype),
        grid_spec=pltpu.PrefetchScalarGridSpec(
            num_scalar_prefetch=0,
            grid=grid,
            in_specs=[
                pl.BlockSpec((plan.tm, D), lambda i, k: (i, 0)),    # x tile
                pl.BlockSpec((1, D), lambda i, k: (0, 0)),          # LN gamma
                pl.BlockSpec((1, D), lambda i, k: (0, 0)),          # LN beta
                pl.BlockSpec((D, plan.tk), lambda i, k: (0, k)),    # W1 chunk
                pl.BlockSpec((1, plan.tk), lambda i, k: (0, k)),    # b1 chunk
                pl.BlockSpec((plan.tk, D), lambda i, k: (k, 0)),    # W2 chunk
                pl.BlockSpec((1, D), lambda i, k: (0, 0)),          # b2
            ],
            out_specs=pl.BlockSpec((plan.tm, D), lambda i, k: (i, 0)),
            scratch_shapes=[
                pltpu.VMEM((plan.tm, D), jnp.bfloat16),   # cached LayerNorm output
                pltpu.VMEM((plan.tm, D), jnp.float32),    # FFN accumulator
            ],
        ),
        compiler_params=pltpu.CompilerParams(
            dimension_semantics=("parallel", "arbitrary"),
            vmem_limit_bytes=plan.vmem_limit,
        ),
        cost_estimate=cost,
    )(x2d, g2d, be2d, w1_p, b1_2d, w2_p, b2_2d)

    return out2d[:N].reshape(B, S, D)


def feed_forward_layer_connection(x, gamma, beta, w1, b1, w2, b2):
    """One-shot convenience wrapper.  For repeated calls, hoist plan_ffn_tiling
    + prepare_ffn_params out of the hot path and call ffn_sublayer_forward."""
    B, S, D = x.shape
    plan = plan_ffn_tiling(B * S, D, w1.shape[1])
    params = prepare_ffn_params(gamma, beta, w1, b1, w2, b2, plan)
    return ffn_sublayer_forward(x, params, plan)


def reference(x, gamma, beta, w1, b1, w2, b2):
    # Pure-JAX f32 reference of x + FFN(LayerNorm(x)).
    mean = jnp.mean(x, axis=-1, keepdims=True)
    var = jnp.mean((x - mean) ** 2, axis=-1, keepdims=True)
    xn = (x - mean) / jnp.sqrt(var + 1e-5) * gamma + beta
    h = jnp.maximum(xn @ w1 + b1, 0.0)
    return x + (h @ w2 + b2)


if __name__ == "__main__":
    batch, seq, size, d_ff = 2, 8, 32, 64

    key = jax.random.PRNGKey(0)
    kx, k1, k2, k3, k4 = jax.random.split(key, 5)

    x = jax.random.normal(kx, (batch, seq, size), dtype=jnp.float32)

    # LayerNorm params as PyTorch-initialized (gamma=1, beta=0).
    gamma = jnp.ones((size,), dtype=jnp.float32)
    beta = jnp.zeros((size,), dtype=jnp.float32)
    w1 = jax.random.normal(k1, (size, d_ff), dtype=jnp.float32) * 0.1
    b1 = jax.random.normal(k2, (d_ff,), dtype=jnp.float32) * 0.1
    w2 = jax.random.normal(k3, (d_ff, size), dtype=jnp.float32) * 0.1
    b2 = jax.random.normal(k4, (size,), dtype=jnp.float32) * 0.1

    # Hoisted path: plan + parameter prep happen once, the kernel call is hot.
    plan = plan_ffn_tiling(batch * seq, size, d_ff)
    params = prepare_ffn_params(gamma, beta, w1, b1, w2, b2, plan)
    params = jax.block_until_ready(params)

    out = ffn_sublayer_forward(x, params, plan)
    out = jax.block_until_ready(out)

    ref = reference(x, gamma, beta, w1, b1, w2, b2)
    assert out.shape == x.shape
    # bf16 MXU operands vs f32 reference -> slightly looser tolerance.
    assert jnp.allclose(out, ref, atol=2e-2, rtol=2e-2), "mismatch vs reference"

    print("KERNEL_OK")
</pallas_src>

<mosaic_0001>
module attributes {stable_mosaic.version = 11 : i64} {
  func.func @ffn_sublayer_kernel(%arg0: i32, %arg1: i32, %arg2: memref<8x32xf32, #tpu.memory_space<vmem>>, %arg3: memref<1x32xf32, #tpu.memory_space<vmem>>, %arg4: memref<1x32xf32, #tpu.memory_space<vmem>>, %arg5: memref<32x64xbf16, #tpu.memory_space<vmem>>, %arg6: memref<1x64xf32, #tpu.memory_space<vmem>>, %arg7: memref<64x32xbf16, #tpu.memory_space<vmem>>, %arg8: memref<1x32xf32, #tpu.memory_space<vmem>>, %arg9: memref<8x32xf32, #tpu.memory_space<vmem>>, %arg10: memref<8x32xbf16, #tpu.memory_space<vmem>>, %arg11: memref<8x32xf32, #tpu.memory_space<vmem>>) attributes {dimension_semantics = [#tpu.dimension_semantics<parallel>, #tpu.dimension_semantics<arbitrary>], iteration_bounds = array<i64: 2, 1>, scalar_prefetch = 0 : i64, scratch_operands = 2 : i64, tpu.core_type = #tpu.core_type<tc>, window_params = [{transform_indices = @transform_0, window_bounds = array<i64: 8, 32>}, {pipeline_mode = #tpu.pipeline_mode<synchronous>, transform_indices = @transform_1, window_bounds = array<i64: 1, 32>}, {pipeline_mode = #tpu.pipeline_mode<synchronous>, transform_indices = @transform_2, window_bounds = array<i64: 1, 32>}, {transform_indices = @transform_3, window_bounds = array<i64: 32, 64>}, {transform_indices = @transform_4, window_bounds = array<i64: 1, 64>}, {transform_indices = @transform_5, window_bounds = array<i64: 64, 32>}, {pipeline_mode = #tpu.pipeline_mode<synchronous>, transform_indices = @transform_6, window_bounds = array<i64: 1, 32>}, {transform_indices = @transform_7, window_bounds = array<i64: 8, 32>}]} {
    %c0_i32 = arith.constant 0 : i32
    %0 = arith.cmpi eq, %arg1, %c0_i32 : i32
    %1 = arith.extui %0 : i1 to i32
    %c0_i32_0 = arith.constant 0 : i32
    %2 = arith.cmpi ne, %1, %c0_i32_0 : i32
    scf.if %2 {
      %c0_16 = arith.constant 0 : index
      %c0_17 = arith.constant 0 : index
      %20 = vector.load %arg2[%c0_16, %c0_17] : memref<8x32xf32, #tpu.memory_space<vmem>>, vector<8x32xf32>
      %cst_18 = arith.constant dense<0.000000e+00> : vector<8xf32>
      %21 = vector.multi_reduction <add>, %20, %cst_18 [1] : vector<8x32xf32> to vector<8xf32>
      %22 = vector.shape_cast %21 : vector<8xf32> to vector<8x1xf32>
      %cst_19 = arith.constant 3.200000e+01 : f32
      %23 = vector.broadcast %cst_19 : f32 to vector<8x1xf32>
      %24 = arith.divf %22, %23 : vector<8x1xf32>
      %25 = vector.broadcast %24 : vector<8x1xf32> to vector<8x32xf32>
      %26 = arith.subf %20, %25 : vector<8x32xf32>
      %27 = vector.broadcast %24 : vector<8x1xf32> to vector<8x32xf32>
      %28 = arith.subf %20, %27 : vector<8x32xf32>
      %29 = arith.mulf %26, %28 : vector<8x32xf32>
      %cst_20 = arith.constant dense<0.000000e+00> : vector<8xf32>
      %30 = vector.multi_reduction <add>, %29, %cst_20 [1] : vector<8x32xf32> to vector<8xf32>
      %31 = vector.shape_cast %30 : vector<8xf32> to vector<8x1xf32>
      %cst_21 = arith.constant 3.200000e+01 : f32
      %32 = vector.broadcast %cst_21 : f32 to vector<8x1xf32>
      %33 = arith.divf %31, %32 : vector<8x1xf32>
      %34 = vector.broadcast %24 : vector<8x1xf32> to vector<8x32xf32>
      %35 = arith.subf %20, %34 : vector<8x32xf32>
      %cst_22 = arith.constant 9.99999974E-6 : f32
      %36 = vector.broadcast %cst_22 : f32 to vector<8x1xf32>
      %37 = arith.addf %33, %36 : vector<8x1xf32>
      %38 = math.rsqrt %37 : vector<8x1xf32>
      %39 = vector.broadcast %38 : vector<8x1xf32> to vector<8x32xf32>
      %40 = arith.mulf %35, %39 : vector<8x32xf32>
      %c0_23 = arith.constant 0 : index
      %c0_24 = arith.constant 0 : index
      %41 = vector.load %arg3[%c0_23, %c0_24] : memref<1x32xf32, #tpu.memory_space<vmem>>, vector<1x32xf32>
      %42 = vector.broadcast %41 : vector<1x32xf32> to vector<8x32xf32>
      %43 = arith.mulf %40, %42 : vector<8x32xf32>
      %c0_25 = arith.constant 0 : index
      %c0_26 = arith.constant 0 : index
      %44 = vector.load %arg4[%c0_25, %c0_26] : memref<1x32xf32, #tpu.memory_space<vmem>>, vector<1x32xf32>
      %45 = vector.broadcast %44 : vector<1x32xf32> to vector<8x32xf32>
      %46 = arith.addf %43, %45 : vector<8x32xf32>
      %47 = arith.truncf %46 : vector<8x32xf32> to vector<8x32xbf16>
      %c0_27 = arith.constant 0 : index
      %c0_28 = arith.constant 0 : index
      %48 = vector.load %arg10[%c0_27, %c0_28] : memref<8x32xbf16, #tpu.memory_space<vmem>>, vector<8x32xbf16>
      tpu.vector_store %arg10[%c0_27, %c0_28], %47 {strides = array<i32>} : memref<8x32xbf16, #tpu.memory_space<vmem>>, vector<8x32xbf16>,
      %cst_29 = arith.constant 0.000000e+00 : f32
      %49 = vector.broadcast %cst_29 : f32 to vector<8x32xf32>
      %c0_30 = arith.constant 0 : index
      %c0_31 = arith.constant 0 : index
      %50 = vector.load %arg11[%c0_30, %c0_31] : memref<8x32xf32, #tpu.memory_space<vmem>>, vector<8x32xf32>
      tpu.vector_store %arg11[%c0_30, %c0_31], %49 {strides = array<i32>} : memref<8x32xf32, #tpu.memory_space<vmem>>, vector<8x32xf32>,
    } else {
    }
    %c0 = arith.constant 0 : index
    %c0_1 = arith.constant 0 : index
    %3 = vector.load %arg10[%c0, %c0_1] : memref<8x32xbf16, #tpu.memory_space<vmem>>, vector<8x32xbf16>
    %c0_2 = arith.constant 0 : index
    %c0_3 = arith.constant 0 : index
    %4 = vector.load %arg5[%c0_2, %c0_3] : memref<32x64xbf16, #tpu.memory_space<vmem>>, vector<32x64xbf16>
    %cst = arith.constant dense<0.000000e+00> : vector<8x64xf32>
    %5 = tpu.matmul %3, %4, %cst {dimension_numbers = #tpu.dot_dimension_numbers<[1], [0], [0], [1], [0, 0, 1, 1], [], []>} : vector<8x32xbf16>, vector<32x64xbf16>, vector<8x64xf32> -> vector<8x64xf32>
    %c0_4 = arith.constant 0 : index
    %c0_5 = arith.constant 0 : index
    %6 = vector.load %arg6[%c0_4, %c0_5] : memref<1x64xf32, #tpu.memory_space<vmem>>, vector<1x64xf32>
    %7 = vector.broadcast %6 : vector<1x64xf32> to vector<8x64xf32>
    %8 = arith.addf %5, %7 : vector<8x64xf32>
    %cst_6 = arith.constant 0.000000e+00 : f32
    %9 = vector.broadcast %cst_6 : f32 to vector<8x64xf32>
    %10 = arith.maximumf %8, %9 : vector<8x64xf32>
    %c0_7 = arith.constant 0 : index
    %c0_8 = arith.constant 0 : index
    %11 = vector.load %arg11[%c0_7, %c0_8] : memref<8x32xf32, #tpu.memory_space<vmem>>, vector<8x32xf32>
    %12 = arith.truncf %10 : vector<8x64xf32> to vector<8x64xbf16>
    %c0_9 = arith.constant 0 : index
    %c0_10 = arith.constant 0 : index
    %13 = vector.load %arg7[%c0_9, %c0_10] : memref<64x32xbf16, #tpu.memory_space<vmem>>, vector<64x32xbf16>
    %cst_11 = arith.constant dense<0.000000e+00> : vector<8x32xf32>
    %14 = tpu.matmul %12, %13, %cst_11 {dimension_numbers = #tpu.dot_dimension_numbers<[1], [0], [0], [1], [0, 0, 1, 1], [], []>} : vector<8x64xbf16>, vector<64x32xbf16>, vector<8x32xf32> -> vector<8x32xf32>
    %15 = arith.addf %11, %14 : vector<8x32xf32>
    %c0_12 = arith.constant 0 : index
    %c0_13 = arith.constant 0 : index
    %16 = vector.load %arg11[%c0_12, %c0_13] : memref<8x32xf32, #tpu.memory_space<vmem>>, vector<8x32xf32>
    tpu.vector_store %arg11[%c0_12, %c0_13], %15 {strides = array<i32>} : memref<8x32xf32, #tpu.memory_space<vmem>>, vector<8x32xf32>,
    %c0_i32_14 = arith.constant 0 : i32
    %17 = arith.cmpi eq, %arg1, %c0_i32_14 : i32
    %18 = arith.extui %17 : i1 to i32
    %c0_i32_15 = arith.constant 0 : i32
    %19 = arith.cmpi ne, %18, %c0_i32_15 : i32
    scf.if %19 {
      %c0_16 = arith.constant 0 : index
      %c0_17 = arith.constant 0 : index
      %20 = vector.load %arg11[%c0_16, %c0_17] : memref<8x32xf32, #tpu.memory_space<vmem>>, vector<8x32xf32>
      %c0_18 = arith.constant 0 : index
      %c0_19 = arith.constant 0 : index
      %21 = vector.load %arg8[%c0_18, %c0_19] : memref<1x32xf32, #tpu.memory_space<vmem>>, vector<1x32xf32>
      %22 = vector.broadcast %21 : vector<1x32xf32> to vector<8x32xf32>
      %23 = arith.addf %20, %22 : vector<8x32xf32>
      %c0_20 = arith.constant 0 : index
      %c0_21 = arith.constant 0 : index
      %24 = vector.load %arg2[%c0_20, %c0_21] : memref<8x32xf32, #tpu.memory_space<vmem>>, vector<8x32xf32>
      %25 = arith.addf %24, %23 : vector<8x32xf32>
      %c0_22 = arith.constant 0 : index
      %c0_23 = arith.constant 0 : index
      %26 = vector.load %arg9[%c0_22, %c0_23] : memref<8x32xf32, #tpu.memory_space<vmem>>, vector<8x32xf32>
      tpu.vector_store %arg9[%c0_22, %c0_23], %25 {strides = array<i32>} : memref<8x32xf32, #tpu.memory_space<vmem>>, vector<8x32xf32>,
    } else {
    }
    return
  }
  func.func @transform_0(%arg0: i32, %arg1: i32) -> (i32, i32) {
    %c0_i32 = arith.constant 0 : i32
    %c0_i32_0 = arith.constant 0 : i32
    return %arg0, %c0_i32 : i32, i32
  }
  func.func @transform_1(%arg0: i32, %arg1: i32) -> (i32, i32) {
    %c0_i32 = arith.constant 0 : i32
    %c0_i32_0 = arith.constant 0 : i32
    %c0_i32_1 = arith.constant 0 : i32
    return %c0_i32, %c0_i32_0 : i32, i32
  }
  func.func @transform_2(%arg0: i32, %arg1: i32) -> (i32, i32) {
    %c0_i32 = arith.constant 0 : i32
    %c0_i32_0 = arith.constant 0 : i32
    %c0_i32_1 = arith.constant 0 : i32
    return %c0_i32, %c0_i32_0 : i32, i32
  }
  func.func @transform_3(%arg0: i32, %arg1: i32) -> (i32, i32) {
    %c0_i32 = arith.constant 0 : i32
    %c0_i32_0 = arith.constant 0 : i32
    return %c0_i32, %arg1 : i32, i32
  }
  func.func @transform_4(%arg0: i32, %arg1: i32) -> (i32, i32) {
    %c0_i32 = arith.constant 0 : i32
    %c0_i32_0 = arith.constant 0 : i32
    return %c0_i32, %arg1 : i32, i32
  }
  func.func @transform_5(%arg0: i32, %arg1: i32) -> (i32, i32) {
    %c0_i32 = arith.constant 0 : i32
    %c0_i32_0 = arith.constant 0 : i32
    return %arg1, %c0_i32 : i32, i32
  }
  func.func @transform_6(%arg0: i32, %arg1: i32) -> (i32, i32) {
    %c0_i32 = arith.constant 0 : i32
    %c0_i32_0 = arith.constant 0 : i32
    %c0_i32_1 = arith.constant 0 : i32
    return %c0_i32, %c0_i32_0 : i32, i32
  }
  func.func @transform_7(%arg0: i32, %arg1: i32) -> (i32, i32) {
    %c0_i32 = arith.constant 0 : i32
    %c0_i32_0 = arith.constant 0 : i32
    return %arg0, %c0_i32 : i32, i32
  }
}

</mosaic_0001>

<llo_original>
// kernel: tpu_custom_call.1
$region0: #{tpu_custom_call.1}
  #allocation0 [shape = 'u32[]', space=smem, size = 0x4, offset = 0x4, fixed_abs, tag = 'smem constant byte address 0x4 - core index']
  #allocation1 [shape = 'u32[144,128]{1,0:T(1,128)}', space=vmem, size = 0x12000, scoped, tag = 'internal scratch']
  #allocation2 [shape = 'bf16[8,32]{1,0:T(8,128)(2,1)}', space=vmem, size = 0x800, scoped, tag = 'scratch operand']
  #allocation3 [shape = 'f32[8,32]{1,0:T(8,128)}', space=vmem, size = 0x1000, scoped, tag = 'scratch operand']
  %s0 = inlined_call_operand.vmem [shape: f32[16,32], index: 0, kind: input, shape index: {}]
  %s1 = inlined_call_operand.vmem [shape: f32[1,32], index: 1, kind: input, shape index: {}]
  %s2 = inlined_call_operand.vmem [shape: f32[1,32], index: 2, kind: input, shape index: {}]
  %s3 = inlined_call_operand.vmem [shape: bf16[32,64], index: 3, kind: input, shape index: {}]
  %s4 = inlined_call_operand.vmem [shape: f32[1,64], index: 4, kind: input, shape index: {}]
  %s5 = inlined_call_operand.vmem [shape: bf16[64,32], index: 5, kind: input, shape index: {}]
  %s6 = inlined_call_operand.vmem [shape: f32[1,32], index: 6, kind: input, shape index: {}]
  %s7 = inlined_call_operand.hbm [shape: f32[16,32], index: 7, kind: output, shape index: {}]
  %s8 = sld [smem:[#allocation0]]
  $region69: #{tpu_custom_call.1} parent=0
    _
  %s10 = ssub.s32 1, %s8
  %s11 = scalar_select 0, %s10, %s8
  $region1: #{tpu_custom_call.1} parent=0
    #allocation4 [shape = 'u8[8192]{0}', space=vmem, size = 0x2000, scoped, tag = 'output window, operand 0']
    #allocation5 [shape = 's32[2]{0}', space=sflag, size = 0x8, scoped, tag = 'scoped memory for tpu_custom_call.1']
    %12 = vsyncpa [#allocation5], 0
    %s13 = scalar_lea.sflag [#allocation5], 1
    %14 = vsyncpa %s13, 0
    loop: start=0, step=1, limit=4
    $region2: #{tpu_custom_call.1} parent=1 // loop_pre_header
      _
    $region3: #{tpu_custom_call.1} parent=1 // loop_header
      %s16 = sphi 0, %s20
      %p17 = scmp.ge.s32.totalorder %s16, 4
      %s23 = sphi 0, %s35
      %s24 = sphi 0, %s31
      %s25 = sphi 0, %s23
      %s26 = sphi 0, %s24
      %s27 = sphi 0, %s25
      %s28 = sphi 0, %s26
      %s38 = sphi 0, %s40
      %s41 = sphi 0, %s38
      %s42 = sphi 0, %s41
      %s58 = sphi 0, %s42
      %s62 = sphi 0, %s62
      %s64 = sphi 0, %s62
      %s65 = sphi 0, %s64
      %s79 = sphi 0, %s65
      %s83 = sphi 0, %s83
      %s85 = sphi 0, %s83
      %s86 = sphi 0, %s85
      %s100 = sphi 0, %s86
      %s106 = sphi 0, %s108
      %s109 = sphi 0, %s106
      %s110 = sphi 0, %s109
      %s126 = sphi 0, %s110
      %s132 = sphi 0, %s134
      %s135 = sphi 0, %s132
      %s136 = sphi 0, %s135
      %s152 = sphi 0, %s136
      %s158 = sphi 0, %s160
      %s161 = sphi 0, %s158
      %s162 = sphi 0, %s161
      %s178 = sphi 0, %s162
      %s182 = sphi 0, %s182
      %s184 = sphi 0, %s182
      %s185 = sphi 0, %s184
      %s199 = sphi 0, %s185
      %s205 = sphi 0, %s207
      %s208 = sphi 0, %s205
      %s209 = sphi 0, %s208
      %s225 = sphi 0, %s209
    $region4: #{tpu_custom_call.1} parent=1 // loop_header_branch
      %19 = sbr.rel (%p17) target = $region8
    $region5: #{tpu_custom_call.1} parent=1 // loop_body
      %s21 = ssub.s32 %s16, 1
      %s22 = ssub.s32 %s16, 2
      %s29 = sadd.s32 1, %s24
      %p30 = scmp.ge.s32.totalorder %s29, 1
      %s31 = scalar_select %p30, 0, %s29
      %s32 = sadd.s32 1, %s23
      %s33 = scalar_select %p30, %s32, %s23
      %p34 = scmp.ge.s32.totalorder %s33, 2
      %s35 = scalar_select %p34, 0, %s33
      %s36 = ssub.s32 %s23, %s35
      %p37 = scmp.eq.s32.totalorder %s36, 0
      %s39 = sadd.s32 %s38, 1
      %s40 = scalar_select %p37, %s38, %s39
      %p43 = pneg %p37
      %p44 = scmp.eq.s32.totalorder %s16, 1
      %p45 = por %p43, %p44
      %p46 = scmp.ne.s32.totalorder %s38, %s41
      %p47 = scmp.eq.s32.totalorder %s16, 0
      %p48 = por %p46, %p47
      %p49 = scmp.ne.s32.totalorder %s38, %s41
      %p50 = scmp.eq.s32.totalorder %s21, 1
      %p51 = por %p49, %p50
      %p52 = scmp.ne.s32.totalorder %s41, %s42
      %p53 = scmp.eq.s32.totalorder %s21, 0
      %p54 = por %p52, %p53
      %p55 = scmp.ne.s32.totalorder %s41, %s42
      %p56 = scmp.eq.s32.totalorder %s22, 1
      %p57 = por %p55, %p56
      %p59 = scmp.ne.s32.totalorder %s42, %s58
      %p60 = scmp.eq.s32.totalorder %s22, 0
      %p61 = por %p59, %p60
      %s63 = sadd.s32 %s62, 1
      %p66 = scmp.eq.s32.totalorder %s16, 1
      %p67 = scmp.ne.s32.totalorder %s62, %s64
      %p68 = scmp.eq.s32.totalorder %s16, 0
      %p69 = por %p67, %p68
      %p70 = scmp.ne.s32.totalorder %s62, %s64
      %p71 = scmp.eq.s32.totalorder %s21, 1
      %p72 = por %p70, %p71
      %p73 = scmp.ne.s32.totalorder %s64, %s65
      %p74 = scmp.eq.s32.totalorder %s21, 0
      %p75 = por %p73, %p74
      %p76 = scmp.ne.s32.totalorder %s64, %s65
      %p77 = scmp.eq.s32.totalorder %s22, 1
      %p78 = por %p76, %p77
      %p80 = scmp.ne.s32.totalorder %s65, %s79
      %p81 = scmp.eq.s32.totalorder %s22, 0
      %p82 = por %p80, %p81
      %s84 = sadd.s32 %s83, 1
      %p87 = scmp.eq.s32.totalorder %s16, 1
      %p88 = scmp.ne.s32.totalorder %s83, %s85
      %p89 = scmp.eq.s32.totalorder %s16, 0
      %p90 = por %p88, %p89
      %p91 = scmp.ne.s32.totalorder %s83, %s85
      %p92 = scmp.eq.s32.totalorder %s21, 1
      %p93 = por %p91, %p92
      %p94 = scmp.ne.s32.totalorder %s85, %s86
      %p95 = scmp.eq.s32.totalorder %s21, 0
      %p96 = por %p94, %p95
      %p97 = scmp.ne.s32.totalorder %s85, %s86
      %p98 = scmp.eq.s32.totalorder %s22, 1
      %p99 = por %p97, %p98
      %p101 = scmp.ne.s32.totalorder %s86, %s100
      %p102 = scmp.eq.s32.totalorder %s22, 0
      %p103 = por %p101, %p102
      %s104 = ssub.s32 %s24, %s31
      %p105 = scmp.eq.s32.totalorder %s104, 0
      %s107 = sadd.s32 %s106, 1
      %s108 = scalar_select %p105, %s106, %s107
      %p111 = pneg %p105
      %p112 = scmp.eq.s32.totalorder %s16, 1
      %p113 = por %p111, %p112
      %p114 = scmp.ne.s32.totalorder %s106, %s109
      %p115 = scmp.eq.s32.totalorder %s16, 0
      %p116 = por %p114, %p115
      %p117 = scmp.ne.s32.totalorder %s106, %s109
      %p118 = scmp.eq.s32.totalorder %s21, 1
      %p119 = por %p117, %p118
      %p120 = scmp.ne.s32.totalorder %s109, %s110
      %p121 = scmp.eq.s32.totalorder %s21, 0
      %p122 = por %p120, %p121
      %p123 = scmp.ne.s32.totalorder %s109, %s110
      %p124 = scmp.eq.s32.totalorder %s22, 1
      %p125 = por %p123, %p124
      %p127 = scmp.ne.s32.totalorder %s110, %s126
      %p128 = scmp.eq.s32.totalorder %s22, 0
      %p129 = por %p127, %p128
      %s130 = ssub.s32 %s24, %s31
      %p131 = scmp.eq.s32.totalorder %s130, 0
      %s133 = sadd.s32 %s132, 1
      %s134 = scalar_select %p131, %s132, %s133
      %p137 = pneg %p131
      %p138 = scmp.eq.s32.totalorder %s16, 1
      %p139 = por %p137, %p138
      %p140 = scmp.ne.s32.totalorder %s132, %s135
      %p141 = scmp.eq.s32.totalorder %s16, 0
      %p142 = por %p140, %p141
      %p143 = scmp.ne.s32.totalorder %s132, %s135
      %p144 = scmp.eq.s32.totalorder %s21, 1
      %p145 = por %p143, %p144
      %p146 = scmp.ne.s32.totalorder %s135, %s136
      %p147 = scmp.eq.s32.totalorder %s21, 0
      %p148 = por %p146, %p147
      %p149 = scmp.ne.s32.totalorder %s135, %s136
      %p150 = scmp.eq.s32.totalorder %s22, 1
      %p151 = por %p149, %p150
      %p153 = scmp.ne.s32.totalorder %s136, %s152
      %p154 = scmp.eq.s32.totalorder %s22, 0
      %p155 = por %p153, %p154
      %s156 = ssub.s32 %s24, %s31
      %p157 = scmp.eq.s32.totalorder %s156, 0
      %s159 = sadd.s32 %s158, 1
      %s160 = scalar_select %p157, %s158, %s159
      %p163 = pneg %p157
      %p164 = scmp.eq.s32.totalorder %s16, 1
      %p165 = por %p163, %p164
      %p166 = scmp.ne.s32.totalorder %s158, %s161
      %p167 = scmp.eq.s32.totalorder %s16, 0
      %p168 = por %p166, %p167
      %p169 = scmp.ne.s32.totalorder %s158, %s161
      %p170 = scmp.eq.s32.totalorder %s21, 1
      %p171 = por %p169, %p170
      %p172 = scmp.ne.s32.totalorder %s161, %s162
      %p173 = scmp.eq.s32.totalorder %s21, 0
      %p174 = por %p172, %p173
      %p175 = scmp.ne.s32.totalorder %s161, %s162
      %p176 = scmp.eq.s32.totalorder %s22, 1
      %p177 = por %p175, %p176
      %p179 = scmp.ne.s32.totalorder %s162, %s178
      %p180 = scmp.eq.s32.totalorder %s22, 0
      %p181 = por %p179, %p180
      %s183 = sadd.s32 %s182, 1
      %p186 = scmp.eq.s32.totalorder %s16, 1
      %p187 = scmp.ne.s32.totalorder %s182, %s184
      %p188 = scmp.eq.s32.totalorder %s16, 0
      %p189 = por %p187, %p188
      %p190 = scmp.ne.s32.totalorder %s182, %s184
      %p191 = scmp.eq.s32.totalorder %s21, 1
      %p192 = por %p190, %p191
      %p193 = scmp.ne.s32.totalorder %s184, %s185
      %p194 = scmp.eq.s32.totalorder %s21, 0
      %p195 = por %p193, %p194
      %p196 = scmp.ne.s32.totalorder %s184, %s185
      %p197 = scmp.eq.s32.totalorder %s22, 1
      %p198 = por %p196, %p197
      %p200 = scmp.ne.s32.totalorder %s185, %s199
      %p201 = scmp.eq.s32.totalorder %s22, 0
      %p202 = por %p200, %p201
      %s203 = ssub.s32 %s23, %s35
      %p204 = scmp.eq.s32.totalorder %s203, 0
      %s206 = sadd.s32 %s205, 1
      %s207 = scalar_select %p204, %s205, %s206
      %p210 = pneg %p204
      %p211 = scmp.eq.s32.totalorder %s16, 1
      %p212 = por %p210, %p211
      %p213 = scmp.ne.s32.totalorder %s205, %s208
      %p214 = scmp.eq.s32.totalorder %s16, 0
      %p215 = por %p213, %p214
      %p216 = scmp.ne.s32.totalorder %s205, %s208
      %p217 = scmp.eq.s32.totalorder %s21, 1
      %p218 = por %p216, %p217
      %p219 = scmp.ne.s32.totalorder %s208, %s209
      %p220 = scmp.eq.s32.totalorder %s21, 0
      %p221 = por %p219, %p220
      %p222 = scmp.ne.s32.totalorder %s208, %s209
      %p223 = scmp.eq.s32.totalorder %s22, 1
      %p224 = por %p222, %p223
      %p226 = scmp.ne.s32.totalorder %s209, %s225
      %p227 = scmp.eq.s32.totalorder %s22, 0
      %p228 = por %p226, %p227
      %p229 = scmp.le.s32.totalorder 1, %s16
      %p230 = scmp.lt.s32.totalorder %s16, 3
      %p231 = pnand %p229, %p230
      %p232 = pneg %p231
      // Predicated region
      $region9: #{tpu_custom_call.1} parent=5 // pred_check
        _
      $region10: #{tpu_custom_call.1} parent=5 // pred_check_branch
        %234 = sbr.rel (%p231) target = $region12
      $region11: #{tpu_custom_call.1} parent=5 // pred_region
        %s235 = ssub.s32 %s16, 1
        // Predicated region
        $region13: #{tpu_custom_call.1} parent=11 // pred_check
          %p236 = pneg %p75
        $region14: #{tpu_custom_call.1} parent=11 // pred_check_branch
          %238 = sbr.rel (%p236) target = $region16
        $region15: #{tpu_custom_call.1} parent=11 // pred_region
          _
        $region16: #{tpu_custom_call.1} parent=11 // pred_fallthru
          _
        // Predicated region
        $region17: #{tpu_custom_call.1} parent=11 // pred_check
          %p239 = pneg %p96
        $region18: #{tpu_custom_call.1} parent=11 // pred_check_branch
          %241 = sbr.rel (%p239) target = $region20
        $region19: #{tpu_custom_call.1} parent=11 // pred_region
          _
        $region20: #{tpu_custom_call.1} parent=11 // pred_fallthru
          _
        // Predicated region
        $region21: #{tpu_custom_call.1} parent=11 // pred_check
          %p242 = pneg %p122
        $region22: #{tpu_custom_call.1} parent=11 // pred_check_branch
          %244 = sbr.rel (%p242) target = $region24
        $region23: #{tpu_custom_call.1} parent=11 // pred_region
          %p245 = scmp.lt.s32.totalorder %s26, 0
          %s246 = scalar_select %p245, %s26, 0
          %s247 = smul.addr %s246, 4
          %s248 = scalar_lea.vmem %s3, %s247
        $region24: #{tpu_custom_call.1} parent=11 // pred_fallthru
          _
        // Predicated region
        $region25: #{tpu_custom_call.1} parent=11 // pred_check
          %p249 = pneg %p148
        $region26: #{tpu_custom_call.1} parent=11 // pred_check_branch
          %251 = sbr.rel (%p249) target = $region28
        $region27: #{tpu_custom_call.1} parent=11 // pred_region
          %p252 = scmp.lt.s32.totalorder %s26, 0
          %s253 = scalar_select %p252, %s26, 0
          %s254 = scalar_lea.vmem %s4, %s253
        $region28: #{tpu_custom_call.1} parent=11 // pred_fallthru
          _
        // Predicated region
        $region29: #{tpu_custom_call.1} parent=11 // pred_check
          %p255 = pneg %p174
        $region30: #{tpu_custom_call.1} parent=11 // pred_check_branch
          %257 = sbr.rel (%p255) target = $region32
        $region31: #{tpu_custom_call.1} parent=11 // pred_region
          %s258 = smul.u32 8, %s26
          %p259 = scmp.lt.s32.totalorder %s258, 7
          %s260 = scalar_select %p259, %s258, 7
          %s261 = smul.addr %s260, 4
          %s262 = scalar_lea.vmem %s5, %s261
          %s263 = smul.u32 8, %s26
        $region32: #{tpu_custom_call.1} parent=11 // pred_fallthru
          _
        // Predicated region
        $region33: #{tpu_custom_call.1} parent=11 // pred_check
          %p264 = pneg %p195
        $region34: #{tpu_custom_call.1} parent=11 // pred_check_branch
          %266 = sbr.rel (%p264) target = $region36
        $region35: #{tpu_custom_call.1} parent=11 // pred_region
          _
        $region36: #{tpu_custom_call.1} parent=11 // pred_fallthru
          _
      $region12: #{tpu_custom_call.1} parent=5 // pred_fallthru
        _
      %p267 = scmp.lt.s32.totalorder %s16, 2
      // Predicated region
      $region37: #{tpu_custom_call.1} parent=5 // pred_check
        %p268 = pneg %p267
      $region38: #{tpu_custom_call.1} parent=5 // pred_check_branch
        %270 = sbr.rel (%p268) target = $region40
      $region39: #{tpu_custom_call.1} parent=5 // pred_region
        // Predicated region
        $region41: #{tpu_custom_call.1} parent=39 // pred_check
          %p271 = pneg %p48
        $region42: #{tpu_custom_call.1} parent=39 // pred_check_branch
          %273 = sbr.rel (%p271) target = $region44
        $region43: #{tpu_custom_call.1} parent=39 // pred_region
          %p274 = scmp.lt.s32.totalorder %s23, 1
          %s275 = scalar_select %p274, %s23, 1
          %s276 = smul.addr %s275, 8
          %s277 = scalar_lea.vmem %s0, %s276
        $region44: #{tpu_custom_call.1} parent=39 // pred_fallthru
          _
      $region40: #{tpu_custom_call.1} parent=5 // pred_fallthru
        _
      %p278 = scmp.le.s32.totalorder 1, %s16
      %p279 = scmp.lt.s32.totalorder %s16, 3
      %p280 = pnand %p278, %p279
      %p281 = pneg %p280
      // Predicated region
      $region45: #{tpu_custom_call.1} parent=5 // pred_check
        _
      $region46: #{tpu_custom_call.1} parent=5 // pred_check_branch
        %283 = sbr.rel (%p280) target = $region48
      $region47: #{tpu_custom_call.1} parent=5 // pred_region
        %s284 = ssub.s32 %s16, 1
        %p285 = scmp.lt.s32.totalorder %s25, 1
        %s286 = scalar_select %p285, %s25, 1
        %s287 = smul.addr %s286, 8
        %s288 = scalar_lea.vmem %s0, %s287
        %p289 = pneg %p54
        %p290 = pneg %p51
        %p291 = pneg %p75
        %p292 = pneg %p72
        %p293 = pneg %p96
        %p294 = pneg %p93
        %p295 = scmp.lt.s32.totalorder %s26, 0
        %s296 = scalar_select %p295, %s26, 0
        %s297 = smul.addr %s296, 4
        %s298 = scalar_lea.vmem %s3, %s297
        %p299 = pneg %p122
        %p300 = pneg %p119
        %p301 = scmp.lt.s32.totalorder %s26, 0
        %s302 = scalar_select %p301, %s26, 0
        %s303 = scalar_lea.vmem %s4, %s302
        %p304 = pneg %p148
        %p305 = pneg %p145
        %s306 = smul.u32 8, %s26
        %p307 = scmp.lt.s32.totalorder %s306, 7
        %s308 = scalar_select %p307, %s306, 7
        %s309 = smul.addr %s308, 4
        %s310 = scalar_lea.vmem %s5, %s309
        %p311 = pneg %p174
        %p312 = pneg %p171
        %p313 = pneg %p195
        %p314 = pneg %p192
        %p315 = pneg %p221
        %p316 = pneg %p218
        %s317 = sand.u32 %s208, 1
        %s318 = scalar_lea.sflag [#allocation5], %s317
        %s319 = sand.u32 %s208, 1
        %s320 = smul.addr %s319, 8
        %s321 = scalar_lea.vmem [#allocation4], %s320
        %p322 = scmp.lt.s32.totalorder %s25, 1
        %s323 = scalar_select %p322, %s25, 1
        %s324 = smul.addr %s323, 8
        %s325 = scalar_lea.vmem %s0, %s324
        %p326 = scmp.lt.s32.totalorder %s26, 0
        %s327 = scalar_select %p326, %s26, 0
        %s328 = smul.addr %s327, 4
        %s329 = scalar_lea.vmem %s3, %s328
        %p330 = scmp.lt.s32.totalorder %s26, 0
        %s331 = scalar_select %p330, %s26, 0
        %s332 = scalar_lea.vmem %s4, %s331
        %s333 = smul.u32 8, %s26
        %p334 = scmp.lt.s32.totalorder %s333, 7
        %s335 = scalar_select %p334, %s333, 7
        %s336 = smul.addr %s335, 4
        %s337 = scalar_lea.vmem %s5, %s336
        %s338 = smul.u32 8, %s26
        %p340 = scmp.eq.s32.totalorder %s26, 0
        // Predicated region
        $region49: #{tpu_custom_call.1} parent=47 // pred_check
          %p341 = pneg %p340
        $region50: #{tpu_custom_call.1} parent=47 // pred_check_branch
          %343 = sbr.rel (%p341) target = $region52
        $region51: #{tpu_custom_call.1} parent=47 // pred_region
          %v344 = vld [vmem:[%s325] sm:$0xff]
          %vm345 = vcmask 261120
          %v346 = vsel %vm345, %v344, 0.0
          %347 = vadd.xlane.f32.xlu0 %v346
          %v348 = vpop.xlane.xlu0 %347
          %v349 = vrcp.pop 32.0
          %v350 = vmul.f32 %v348, %v349
          %v351 = vsub.f32 %v344, %v350
          %v352 = vmul.f32 %v351, %v351
          %v353 = vsel %vm345, %v352, 0.0
          %354 = vadd.xlane.f32.xlu0 %v353
          %v355 = vpop.xlane.xlu0 %354
          %v356 = vmul.f32 %v355, %v349
          %v357 = vadd.f32 %v356, 1e-05
          %v358 = vrsqrt.pop %v357
          %v359 = vmul.f32 %v351, %v358
          %v360 = vld [vmem:[%s1] sm:$0x1]
          %v362 = vlaneseq
          %v363 = vshrl.u32 %v362, 7
          %v364 = vsub.s32 0, %v363
          %v365 = vrot.slane %v360, %v364
          %v367 = vmul.f32 %v359, %v365
          %v368 = vld [vmem:[%s2] sm:$0x1]
          %v370 = vlaneseq
          %v371 = vshrl.u32 %v370, 7
          %v372 = vsub.s32 0, %v371
          %v373 = vrot.slane %v368, %v372
          %v375 = vadd.f32 %v367, %v373
          %v376 = vpack.c.bf16 %v375, %v375
          %vm377 = vcmask 257024
          %378 = vst.msk [vmem:[#allocation2] sm:$0xf] %vm377, %v376
          %379 = vst.msk [vmem:[#allocation3] sm:$0xff] %vm345, 0.0
        $region52: #{tpu_custom_call.1} parent=47 // pred_fallthru
          _
        %v380 = vld [vmem:[#allocation2] sm:$0xf]
        %v381 = vld [vmem:[%s329] sm:$0xf]
        %v382 = vld [vmem:[%s329 + $0x4] sm:$0xf]
        %v383 = vld [vmem:[%s329 + $0x8] sm:$0xf]
        %v384 = vld [vmem:[%s329 + $0xc] sm:$0xf]
        %v385 = vld [vmem:[%s332] sm:$0x1]
        %v387 = vlaneseq
        %v388 = vshrl.u32 %v387, 7
        %v389 = vsub.s32 0, %v388
        %v390 = vrot.slane %v385, %v389
        %v396 = vunpack.c.l.b16 %v381
        %v397 = vunpack.c.l.b16 %v382
        %v398 = vunpack.c.l.b16 %v383
        %v399 = vunpack.c.l.b16 %v384
        %v400 = vpack.c.b16 %v397, %v396
        %v401 = vpack.c.b16 %v399, %v398
        %vm404 = vcmask 261120
        %v406 = vsel %vm404, %v380, 0
        %408 = vmatprep.subr.bf16.mxu0 0
        %409 = vmatpush1.bf16.msra.mxu0 0
        %410 = vmatprep.subr.bf16.mxu0 0
        %411 = vmatpush1.bf16.msra.mxu0 0
        %412 = vmatprep.subr.bf16.mxu0 0
        %413 = vmatpush1.bf16.msra.mxu0 0
        %414 = vmatprep.subr.bf16.mxu0 0
        %415 = vmatpush1.bf16.msra.mxu0 0
        %416 = vmatprep.subr.bf16.mxu0 0
        %417 = vmatpush1.bf16.msra.mxu0 0
        %418 = vmatprep.subr.bf16.mxu0 0
        %419 = vmatpush1.bf16.msra.mxu0 0
        %420 = vmatprep.subr.bf16.mxu0 0
        %421 = vmatpush1.bf16.msra.mxu0 %v401
        %422 = vmatprep.subr.bf16.mxu0 0
        %423 = vmatpush1.bf16.msra.mxu0 %v400
        %424 = vmatprep.subr.bf16.mxu0 0
        %425 = vmatpush2.bf16.msra.mxu0 0
        %426 = vmatprep.subr.bf16.mxu0 0
        %427 = vmatpush2.bf16.msra.mxu0 0
        %428 = vmatprep.subr.bf16.mxu0 0
        %429 = vmatpush2.bf16.msra.mxu0 0
        %430 = vmatprep.subr.bf16.mxu0 0
        %431 = vmatpush2.bf16.msra.mxu0 0
        %432 = vmatprep.subr.bf16.mxu0 0
        %433 = vmatpush2.bf16.msra.mxu0 0
        %434 = vmatprep.subr.bf16.mxu0 0
        %435 = vmatpush2.bf16.msra.mxu0 0
        %436 = vmatprep.subr.bf16.mxu0 0
        %437 = vmatpush2.bf16.msra.mxu0 0
        %438 = vmatprep.subr.bf16.mxu0 0
        %439 = vmatpush2.bf16.msra.mxu0 0
        %440 = vmatprep.mubr.bf16.mxu0 0
        %441 = vmatmul.mubr.bf16.gmra.mxu0 %v406
        %v442 = vpop.f32.mrf.mxu0
        %v443 = vadd.f32 %v390, %v442
        %v444 = vpop.f32.mrf.mxu0
        %v445 = vpop.f32.mrf.mxu0
        %v446 = vpop.f32.mrf.mxu0
        %447 = vdwg.mxu0
        %v448 = vmax.f32 %v443, 0.0
        %v449 = vld [vmem:[#allocation3] sm:$0xff]
        %v450 = vpack.c.bf16 %v448, %v448
        %v451 = vld [vmem:[%s337] sm:$0xf]
        %v452 = vld [vmem:[%s337 + $0x4] sm:$0xf]
        %v453 = vld [vmem:[%s337 + $0x8] sm:$0xf]
        %v454 = vld [vmem:[%s337 + $0xc] sm:$0xf]
        %v455 = vld [vmem:[%s337 + $0x10] sm:$0xf]
        %v456 = vld [vmem:[%s337 + $0x14] sm:$0xf]
        %v457 = vld [vmem:[%s337 + $0x18] sm:$0xf]
        %v458 = vld [vmem:[%s337 + $0x1c] sm:$0xf]
        %v467 = vunpack.c.l.b16 %v451
        %v468 = vunpack.c.l.b16 %v452
        %v469 = vunpack.c.l.b16 %v453
        %v470 = vunpack.c.l.b16 %v454
        %v471 = vunpack.c.l.b16 %v455
        %v472 = vunpack.c.l.b16 %v456
        %v473 = vunpack.c.l.b16 %v457
        %v474 = vunpack.c.l.b16 %v458
        %v475 = vpack.c.b16 %v468, %v467
        %v476 = vpack.c.b16 %v470, %v469
        %v477 = vpack.c.b16 %v472, %v471
        %v478 = vpack.c.b16 %v474, %v473
        %vm483 = vcmask 523264
        %v485 = vsel %vm483, %v450, 0
        %487 = vmatprep.subr.bf16.mxu0 0
        %488 = vmatpush1.bf16.msra.mxu0 0
        %489 = vmatprep.subr.bf16.mxu0 0
        %490 = vmatpush1.bf16.msra.mxu0 0
        %491 = vmatprep.subr.bf16.mxu0 0
        %492 = vmatpush1.bf16.msra.mxu0 0
        %493 = vmatprep.subr.bf16.mxu0 0
        %494 = vmatpush1.bf16.msra.mxu0 0
        %495 = vmatprep.subr.bf16.mxu0 0
        %496 = vmatpush1.bf16.msra.mxu0 %v478
        %497 = vmatprep.subr.bf16.mxu0 0
        %498 = vmatpush1.bf16.msra.mxu0 %v477
        %499 = vmatprep.subr.bf16.mxu0 0
        %500 = vmatpush1.bf16.msra.mxu0 %v476
        %501 = vmatprep.subr.bf16.mxu0 0
        %502 = vmatpush1.bf16.msra.mxu0 %v475
        %503 = vmatprep.subr.bf16.mxu0 0
        %504 = vmatpush2.bf16.msra.mxu0 0
        %505 = vmatprep.subr.bf16.mxu0 0
        %506 = vmatpush2.bf16.msra.mxu0 0
        %507 = vmatprep.subr.bf16.mxu0 0
        %508 = vmatpush2.bf16.msra.mxu0 0
        %509 = vmatprep.subr.bf16.mxu0 0
        %510 = vmatpush2.bf16.msra.mxu0 0
        %511 = vmatprep.subr.bf16.mxu0 0
        %512 = vmatpush2.bf16.msra.mxu0 0
        %513 = vmatprep.subr.bf16.mxu0 0
        %514 = vmatpush2.bf16.msra.mxu0 0
        %515 = vmatprep.subr.bf16.mxu0 0
        %516 = vmatpush2.bf16.msra.mxu0 0
        %517 = vmatprep.subr.bf16.mxu0 0
        %518 = vmatpush2.bf16.msra.mxu0 0
        %519 = vmatprep.mubr.bf16.mxu0 0
        %520 = vmatmul.mubr.bf16.gmra.mxu0 %v485
        %v521 = vpop.f32.mrf.mxu0
        %v522 = vadd.f32 0.0, %v521
        %v523 = vpop.f32.mrf.mxu0
        %v524 = vpop.f32.mrf.mxu0
        %v525 = vpop.f32.mrf.mxu0
        %526 = vdwg.mxu0
        %v527 = vadd.f32 %v449, %v522
        %528 = vst.msk [vmem:[#allocation3] sm:$0xff] %vm404, %v527
        // Predicated region
        $region53: #{tpu_custom_call.1} parent=47 // pred_check
          %p529 = pneg %p340
        $region54: #{tpu_custom_call.1} parent=47 // pred_check_branch
          %531 = sbr.rel (%p529) target = $region56
        $region55: #{tpu_custom_call.1} parent=47 // pred_region
          %v532 = vld [vmem:[#allocation3] sm:$0xff]
          %v533 = vld [vmem:[%s6] sm:$0x1]
          %v535 = vlaneseq
          %v536 = vshrl.u32 %v535, 7
          %v537 = vsub.s32 0, %v536
          %v538 = vrot.slane %v533, %v537
          %v540 = vadd.f32 %v532, %v538
          %v541 = vld [vmem:[%s325] sm:$0xff]
          %v542 = vadd.f32 %v541, %v540
          %543 = vst.msk [vmem:[%s321] sm:$0xff] %vm404, %v542
        $region56: #{tpu_custom_call.1} parent=47 // pred_fallthru
          _
        %s544 = sand.u32 %s208, 1
        %s545 = scalar_lea.sflag [#allocation5], %s544
        %s546 = sand.u32 %s208, 1
        %s547 = smul.addr %s546, 8
        %s548 = scalar_lea.vmem [#allocation4], %s547
        // Predicated region
        $region57: #{tpu_custom_call.1} parent=47 // pred_check
          %p549 = pneg %p218
        $region58: #{tpu_custom_call.1} parent=47 // pred_check_branch
          %551 = sbr.rel (%p549) target = $region60
        $region59: #{tpu_custom_call.1} parent=47 // pred_region
          %s553 = ssub.s32 128, 128
          %554 = vsyncadd %s545, %s553
          %s555 = smul.addr %s25, 128
          %s556 = scalar_lea.hbm %s7, %s555
          %s558 = sshll.u32 %s548, 4
          %s559 = int_to_ptr.vmem [resolvable:$true] %s558
          %561 = dma.vmem_to_hbm [thread:$0]  %s559, 128, %s556, %s545
        $region60: #{tpu_custom_call.1} parent=47 // pred_fallthru
          _
      $region48: #{tpu_custom_call.1} parent=5 // pred_fallthru
        _
      %p562 = scmp.le.s32.totalorder 2, %s16
      // Predicated region
      $region61: #{tpu_custom_call.1} parent=5 // pred_check
        %p563 = pneg %p562
      $region62: #{tpu_custom_call.1} parent=5 // pred_check_branch
        %565 = sbr.rel (%p563) target = $region64
      $region63: #{tpu_custom_call.1} parent=5 // pred_region
        %s566 = ssub.s32 %s16, 2
        // Predicated region
        $region65: #{tpu_custom_call.1} parent=63 // pred_check
          %p567 = pneg %p224
        $region66: #{tpu_custom_call.1} parent=63 // pred_check_branch
          %569 = sbr.rel (%p567) target = $region68
        $region67: #{tpu_custom_call.1} parent=63 // pred_region
          %s570 = sand.u32 %s209, 1
          %s571 = scalar_lea.sflag [#allocation5], %s570
          %s572 = sand.u32 %s209, 1
          %s573 = smul.addr %s572, 8
          %s574 = scalar_lea.vmem [#allocation4], %s573
          %575 = dma.done %s571, 128
        $region68: #{tpu_custom_call.1} parent=63 // pred_fallthru
          _
      $region64: #{tpu_custom_call.1} parent=5 // pred_fallthru
        _
    $region6: #{tpu_custom_call.1} parent=1 // loop_footer
      %s20 = sadd.s32 1, %s16
    $region7: #{tpu_custom_call.1} parent=1 // loop_footer_branch
      %15 = sbr.rel target = $region3
    $region8: #{tpu_custom_call.1} parent=1 // loop_exit
      _
    %576 = vsyncpa [#allocation5], 1
    %s577 = scalar_lea.sflag [#allocation5], 1
    %578 = vsyncpa %s577, 1

</llo_original>
